<compile_context>
chip_gen: v7x
topology: tpu7x:2x2x1
jax: 0.10.0
libtpu: 0.0.40
codegen_flags: <defaults>
</compile_context>

<pallas_src>
import functools

import jax
import jax.numpy as jnp
import numpy as np
from jax import lax
from jax.experimental import pallas as pl
from jax.experimental.pallas import tpu as pltpu


# --------------------------------------------------------------------------
# Prologue: 1x1-conv K and V projections, with a fused ones-row and padding
# mask, stored lane-dense in the MXU dtype.
# --------------------------------------------------------------------------
def kv_proj_kernel(x_ref, wk_ref, bk_ref, wv_ref, bv_ref, k_out_ref, v_out_ref,
                   *, n_valid, mask_pad, mm_dtype):
    x_mm = x_ref[0].astype(mm_dtype)                                  # (C, TN)
    k = jnp.dot(wk_ref[...], x_mm, preferred_element_type=jnp.float32) + bk_ref[...]   # (Cq, TN)
    v = jnp.dot(wv_ref[...], x_mm, preferred_element_type=jnp.float32) + bv_ref[...]   # (C,  TN)

    tn = x_mm.shape[-1]
    ones = jnp.ones((1, tn), jnp.float32)
    v_aug = jnp.concatenate([v, ones], axis=0)                        # (C+1, TN)
    if mask_pad:
        # Zero padded key columns (values AND the ones row) so padded keys
        # contribute nothing to either the numerator or the fused denominator.
        start = pl.program_id(1) * tn
        pos = start + lax.broadcasted_iota(jnp.int32, (1, tn), 1)
        keep = (pos < n_valid).astype(jnp.float32)                    # (1, TN)
        v_aug = v_aug * keep

    k_out_ref[0] = k.astype(mm_dtype)
    v_out_ref[0] = v_aug.astype(mm_dtype)


# --------------------------------------------------------------------------
# Main kernel: flash-style attention over (query tiles) x (key tiles), with
# fused [acc; l] accumulator and q projected once per query tile.
# --------------------------------------------------------------------------
def sa_attn_kernel(xq_ref, k_ref, v_ref, wq_ref, bq_ref, gamma_ref, out_ref,
                   q_sc, m_sc, acc_sc, *, mm_dtype, exp_dtype):
    ki = pl.program_id(2)

    @pl.when(ki == 0)
    def _init():
        # q projection (1x1 conv == channel matmul) hoisted out of the kv loop.
        xq_mm = xq_ref[0].astype(mm_dtype)                            # (C, TQ)
        q = jnp.dot(wq_ref[...], xq_mm,
                    preferred_element_type=jnp.float32) + bq_ref[...]  # (Cq, TQ)
        q_sc[...] = q.astype(mm_dtype)
        m_sc[...] = jnp.full_like(m_sc, -jnp.inf)
        acc_sc[...] = jnp.zeros_like(acc_sc)

    k = k_ref[0]                                                      # (Cq,  TK) mm_dtype
    v_aug = v_ref[0]                                                  # (C+1, TK) mm_dtype

    # Transposed scores: s_t[j, i] = energy[i, j] = sum_c q[c, i] * k[c, j].
    # Queries on the lane axis keep m / l / acc lane-aligned with the output.
    s_t = lax.dot_general(k, q_sc[...], (((0,), (0,)), ((), ())),
                          preferred_element_type=jnp.float32)         # (TK, TQ) f32

    m_prev = m_sc[...]                                                # (1, TQ)
    m_new = jnp.maximum(m_prev, jnp.max(s_t, axis=0, keepdims=True))
    alpha = jnp.exp(m_prev - m_new)                                   # (1, TQ)

    # exp in exp_dtype (bf16 on v6e/v7x, f32 on v5e); a single copy feeds the MXU.
    p_t = jnp.exp(s_t.astype(exp_dtype) - m_new.astype(exp_dtype))    # (TK, TQ)
    p_mm = p_t.astype(mm_dtype)

    # Fused numerator + denominator: row C of pv is sum_j p_t[j, i] because
    # row C of v_aug is the (padding-masked) ones row.
    pv = jnp.dot(v_aug, p_mm, preferred_element_type=jnp.float32)     # (C+1, TQ)
    acc_sc[...] = alpha * acc_sc[...] + pv
    m_sc[...] = m_new

    @pl.when(ki == pl.num_programs(2) - 1)
    def _finalize():
        c = acc_sc.shape[0] - 1
        inv_l = pl.reciprocal(acc_sc[c:c + 1, :], approx=True)        # (1, TQ)
        out_ref[0] = gamma_ref[0] * (acc_sc[:c, :] * inv_l) + xq_ref[0]  # residual in f32


# --------------------------------------------------------------------------
# Wrapper
# --------------------------------------------------------------------------
def _pick_tile(n_pad, want):
    """Largest multiple of 128 <= want that divides n_pad (n_pad % 128 == 0)."""
    t = max(128, min(want, n_pad))
    t -= t % 128
    while n_pad % t:
        t -= 128
    return t


def _default_exp_dtype():
    # v5e (and older) have no bf16 VPU/EUP path -> keep the exp in f32 there.
    try:
        kind = jax.devices()[0].device_kind.lower()
    except Exception:
        return jnp.bfloat16
    if any(v in kind for v in ("v2", "v3", "v4", "v5")):
        return jnp.float32
    return jnp.bfloat16


def sa_forward(x_nchw, wq, bq, wk, bk, wv, bv, gamma, *,
               mm_dtype=jnp.bfloat16, exp_dtype=None, tq=128, tk=512):
    """x_nchw: (B, C, H, W) f32. wq/wk: (C//2, C, 1, 1); wv: (C, C, 1, 1)."""
    B, C, H, W = x_nchw.shape
    Cq = wq.shape[0]
    N = H * W
    N_pad = ((N + 127) // 128) * 128
    if exp_dtype is None:
        exp_dtype = _default_exp_dtype()

    # Lane-dense layout: (B, C, N) — a pure reshape, no HBM transpose passes.
    x_cn = x_nchw.reshape(B, C, N).astype(jnp.float32)
    if N_pad != N:
        x_cn = jnp.pad(x_cn, ((0, 0), (0, 0), (0, N_pad - N)))

    # Conv weights -> (Cout, Cin) matrices in the MXU dtype; biases as f32 columns.
    wq2 = wq.reshape(Cq, C).astype(mm_dtype)
    wk2 = wk.reshape(Cq, C).astype(mm_dtype)
    wv2 = wv.reshape(C, C).astype(mm_dtype)
    bq2 = bq.reshape(Cq, 1).astype(jnp.float32)
    bk2 = bk.reshape(Cq, 1).astype(jnp.float32)
    bv2 = bv.reshape(C, 1).astype(jnp.float32)
    gamma1 = jnp.reshape(gamma, (1,)).astype(jnp.float32)

    tq = _pick_tile(N_pad, tq)
    tk = _pick_tile(N_pad, tk)
    tn = _pick_tile(N_pad, 2048)

    # ---------------- prologue: K / V(+ones) projection, once per batch ------
    kv_kernel = functools.partial(kv_proj_kernel, n_valid=N,
                                  mask_pad=(N_pad != N), mm_dtype=mm_dtype)
    k_proj, v_aug = pl.pallas_call(
        kv_kernel,
        out_shape=(jax.ShapeDtypeStruct((B, Cq, N_pad), mm_dtype),
                   jax.ShapeDtypeStruct((B, C + 1, N_pad), mm_dtype)),
        grid_spec=pltpu.PrefetchScalarGridSpec(
            num_scalar_prefetch=0,
            grid=(B, N_pad // tn),
            in_specs=[
                pl.BlockSpec((1, C, tn), lambda b, n: (b, 0, n)),     # x tile
                pl.BlockSpec((Cq, C), lambda b, n: (0, 0)),           # Wk
                pl.BlockSpec((Cq, 1), lambda b, n: (0, 0)),           # bk
                pl.BlockSpec((C, C), lambda b, n: (0, 0)),            # Wv
                pl.BlockSpec((C, 1), lambda b, n: (0, 0)),            # bv
            ],
            out_specs=[
                pl.BlockSpec((1, Cq, tn), lambda b, n: (b, 0, n)),
                pl.BlockSpec((1, C + 1, tn), lambda b, n: (b, 0, n)),
            ],
        ),
        compiler_params=pltpu.CompilerParams(
            dimension_semantics=("parallel", "parallel"),
            vmem_limit_bytes=32 * 1024 * 1024,
        ),
    )(x_cn, wk2, bk2, wv2, bv2)

    # ---------------- main: flash-style attention + residual -----------------
    kernel = functools.partial(sa_attn_kernel, mm_dtype=mm_dtype,
                               exp_dtype=exp_dtype)
    out_cn = pl.pallas_call(
        kernel,
        out_shape=jax.ShapeDtypeStruct((B, C, N_pad), jnp.float32),
        grid_spec=pltpu.PrefetchScalarGridSpec(
            num_scalar_prefetch=0,
            grid=(B, N_pad // tq, N_pad // tk),
            in_specs=[
                pl.BlockSpec((1, C, tq), lambda b, qi, ki: (b, 0, qi)),        # x query tile
                pl.BlockSpec((1, Cq, tk), lambda b, qi, ki: (b, 0, ki)),       # K tile
                pl.BlockSpec((1, C + 1, tk), lambda b, qi, ki: (b, 0, ki)),    # V(+ones) tile
                pl.BlockSpec((Cq, C), lambda b, qi, ki: (0, 0)),               # Wq
                pl.BlockSpec((Cq, 1), lambda b, qi, ki: (0, 0)),               # bq
                pl.BlockSpec(memory_space=pltpu.MemorySpace.SMEM),             # gamma
            ],
            out_specs=pl.BlockSpec((1, C, tq), lambda b, qi, ki: (b, 0, qi)),
            scratch_shapes=[
                pltpu.VMEM((Cq, tq), mm_dtype),         # q tile (projected once per (b, qi))
                pltpu.VMEM((1, tq), jnp.float32),       # running max m
                pltpu.VMEM((C + 1, tq), jnp.float32),   # fused accumulator [acc ; l]
            ],
        ),
        compiler_params=pltpu.CompilerParams(
            dimension_semantics=("parallel", "parallel", "arbitrary"),
            vmem_limit_bytes=32 * 1024 * 1024,
        ),
    )(x_cn, k_proj, v_aug, wq2, bq2, gamma1)

    return out_cn[:, :, :N].reshape(B, C, H, W)


# --------------------------------------------------------------------------
# Pure-JAX f32 reference mirroring the PyTorch SA_Module forward exactly.
# --------------------------------------------------------------------------
def sa_reference(x_nchw, wq, bq, wk, bk, wv, bv, gamma):
    B, C, H, W = x_nchw.shape
    Cq = wq.shape[0]
    N = H * W
    x_flat = x_nchw.reshape(B, C, N)                                 # (B, C, N)
    wq2, wk2, wv2 = wq.reshape(Cq, C), wk.reshape(Cq, C), wv.reshape(C, C)
    q = jnp.einsum('oc,bcn->bon', wq2, x_flat) + bq[None, :, None]   # (B, Cq, N)
    k = jnp.einsum('oc,bcn->bon', wk2, x_flat) + bk[None, :, None]   # (B, Cq, N)
    v = jnp.einsum('oc,bcn->bon', wv2, x_flat) + bv[None, :, None]   # (B, C,  N)
    energy = jnp.einsum('bcn,bcm->bnm', q, k)                        # (B, N, N)
    attention = jax.nn.softmax(energy, axis=-1)
    out = jnp.einsum('bcm,bnm->bcn', v, attention)                   # (B, C, N)
    return gamma[0] * out.reshape(B, C, H, W) + x_nchw


def _make_params(key, C, Cq):
    kq, kbq, kk, kbk, kv, kbv = jax.random.split(key, 6)
    bound = 1.0 / np.sqrt(C)
    wq = jax.random.uniform(kq, (Cq, C, 1, 1), jnp.float32, -bound, bound)
    bq = jax.random.uniform(kbq, (Cq,), jnp.float32, -bound, bound)
    wk = jax.random.uniform(kk, (Cq, C, 1, 1), jnp.float32, -bound, bound)
    bk = jax.random.uniform(kbk, (Cq,), jnp.float32, -bound, bound)
    wv = jax.random.uniform(kv, (C, C, 1, 1), jnp.float32, -bound, bound)
    bv = jax.random.uniform(kbv, (C,), jnp.float32, -bound, bound)
    return wq, bq, wk, bk, wv, bv


if __name__ == "__main__":
    key = jax.random.PRNGKey(0)
    kx, kp, kx2 = jax.random.split(key, 3)

    # Main check: B=2, C=4, H=W=16 (N=256, already lane-aligned).
    B, C, H, W = 2, 4, 16, 16
    Cq = C // 2
    x = jax.random.normal(kx, (B, C, H, W), dtype=jnp.float32)
    wq, bq, wk, bk, wv, bv = _make_params(kp, C, Cq)
    # The module initializes gamma to zero; use a nonzero value so the
    # attention path is actually exercised by the numerical check.
    gamma = jnp.full((1,), 0.5, jnp.float32)

    out = jax.block_until_ready(sa_forward(x, wq, bq, wk, bk, wv, bv, gamma))
    ref = sa_reference(x, wq, bq, wk, bk, wv, bv, gamma)
    # bf16 MXU/exp (f32 softmax statistics) + approx EUP reciprocal -> relaxed tol.
    np.testing.assert_allclose(np.asarray(out), np.asarray(ref), atol=2e-2, rtol=2e-2)

    # Secondary check: non-128-multiple H*W exercises the pad-and-mask path.
    H2 = W2 = 10
    x2 = jax.random.normal(kx2, (1, C, H2, W2), dtype=jnp.float32)
    out2 = jax.block_until_ready(sa_forward(x2, wq, bq, wk, bk, wv, bv, gamma))
    ref2 = sa_reference(x2, wq, bq, wk, bk, wv, bv, gamma)
    np.testing.assert_allclose(np.asarray(out2), np.asarray(ref2), atol=2e-2, rtol=2e-2)

    print("KERNEL_OK")
</pallas_src>

<mosaic_0001>
module attributes {stable_mosaic.version = 11 : i64} {
  func.func @kv_proj_kernel(%arg0: i32, %arg1: i32, %arg2: memref<1x4x256xf32, #tpu.memory_space<vmem>>, %arg3: memref<2x4xbf16, #tpu.memory_space<vmem>>, %arg4: memref<2x1xf32, #tpu.memory_space<vmem>>, %arg5: memref<4x4xbf16, #tpu.memory_space<vmem>>, %arg6: memref<4x1xf32, #tpu.memory_space<vmem>>, %arg7: memref<1x2x256xbf16, #tpu.memory_space<vmem>>, %arg8: memref<1x5x256xbf16, #tpu.memory_space<vmem>>) attributes {dimension_semantics = [#tpu.dimension_semantics<parallel>, #tpu.dimension_semantics<parallel>], iteration_bounds = array<i64: 2, 1>, scalar_prefetch = 0 : i64, scratch_operands = 0 : i64, tpu.core_type = #tpu.core_type<tc>, window_params = [{transform_indices = @transform_0, window_bounds = array<i64: 1, 4, 256>}, {pipeline_mode = #tpu.pipeline_mode<synchronous>, transform_indices = @transform_1, window_bounds = array<i64: 2, 4>}, {pipeline_mode = #tpu.pipeline_mode<synchronous>, transform_indices = @transform_2, window_bounds = array<i64: 2, 1>}, {pipeline_mode = #tpu.pipeline_mode<synchronous>, transform_indices = @transform_3, window_bounds = array<i64: 4, 4>}, {pipeline_mode = #tpu.pipeline_mode<synchronous>, transform_indices = @transform_4, window_bounds = array<i64: 4, 1>}, {transform_indices = @transform_5, window_bounds = array<i64: 1, 2, 256>}, {transform_indices = @transform_6, window_bounds = array<i64: 1, 5, 256>}]} {
    %c0 = arith.constant 0 : index
    %c0_0 = arith.constant 0 : index
    %c0_1 = arith.constant 0 : index
    %0 = vector.load %arg2[%c0, %c0_0, %c0_1] : memref<1x4x256xf32, #tpu.memory_space<vmem>>, vector<1x4x256xf32>
    %1 = vector.shape_cast %0 : vector<1x4x256xf32> to vector<4x256xf32>
    %2 = arith.truncf %1 : vector<4x256xf32> to vector<4x256xbf16>
    %c0_2 = arith.constant 0 : index
    %c0_3 = arith.constant 0 : index
    %3 = vector.load %arg3[%c0_2, %c0_3] : memref<2x4xbf16, #tpu.memory_space<vmem>>, vector<2x4xbf16>
    %cst = arith.constant dense<0.000000e+00> : vector<2x256xf32>
    %4 = tpu.matmul %3, %2, %cst {dimension_numbers = #tpu.dot_dimension_numbers<[1], [0], [0], [1], [0, 0, 1, 1], [], []>} : vector<2x4xbf16>, vector<4x256xbf16>, vector<2x256xf32> -> vector<2x256xf32>
    %c0_4 = arith.constant 0 : index
    %c0_5 = arith.constant 0 : index
    %5 = vector.load %arg4[%c0_4, %c0_5] : memref<2x1xf32, #tpu.memory_space<vmem>>, vector<2x1xf32>
    %6 = vector.broadcast %5 : vector<2x1xf32> to vector<2x256xf32>
    %7 = arith.addf %4, %6 : vector<2x256xf32>
    %c0_6 = arith.constant 0 : index
    %c0_7 = arith.constant 0 : index
    %8 = vector.load %arg5[%c0_6, %c0_7] : memref<4x4xbf16, #tpu.memory_space<vmem>>, vector<4x4xbf16>
    %cst_8 = arith.constant dense<0.000000e+00> : vector<4x256xf32>
    %9 = tpu.matmul %8, %2, %cst_8 {dimension_numbers = #tpu.dot_dimension_numbers<[1], [0], [0], [1], [0, 0, 1, 1], [], []>} : vector<4x4xbf16>, vector<4x256xbf16>, vector<4x256xf32> -> vector<4x256xf32>
    %c0_9 = arith.constant 0 : index
    %c0_10 = arith.constant 0 : index
    %10 = vector.load %arg6[%c0_9, %c0_10] : memref<4x1xf32, #tpu.memory_space<vmem>>, vector<4x1xf32>
    %11 = vector.broadcast %10 : vector<4x1xf32> to vector<4x256xf32>
    %12 = arith.addf %9, %11 : vector<4x256xf32>
    %cst_11 = arith.constant 1.000000e+00 : f32
    %13 = vector.broadcast %cst_11 : f32 to vector<1x256xf32>
    %14 = tpu.concatenate %12, %13 in 0 : vector<4x256xf32>, vector<1x256xf32> -> vector<5x256xf32>
    %15 = arith.truncf %7 : vector<2x256xf32> to vector<2x256xbf16>
    %c0_12 = arith.constant 0 : index
    %c0_13 = arith.constant 0 : index
    %c0_14 = arith.constant 0 : index
    %16 = vector.load %arg7[%c0_12, %c0_13, %c0_14] : memref<1x2x256xbf16, #tpu.memory_space<vmem>>, vector<1x2x256xbf16>
    %17 = vector.shape_cast %16 : vector<1x2x256xbf16> to vector<2x256xbf16>
    %18 = vector.shape_cast %15 : vector<2x256xbf16> to vector<1x2x256xbf16>
    tpu.vector_store %arg7[%c0_12, %c0_13, %c0_14], %18 {strides = array<i32>} : memref<1x2x256xbf16, #tpu.memory_space<vmem>>, vector<1x2x256xbf16>,
    %19 = arith.truncf %14 : vector<5x256xf32> to vector<5x256xbf16>
    %c0_15 = arith.constant 0 : index
    %c0_16 = arith.constant 0 : index
    %c0_17 = arith.constant 0 : index
    %20 = vector.load %arg8[%c0_15, %c0_16, %c0_17] : memref<1x5x256xbf16, #tpu.memory_space<vmem>>, vector<1x5x256xbf16>
    %21 = vector.shape_cast %20 : vector<1x5x256xbf16> to vector<5x256xbf16>
    %22 = vector.shape_cast %19 : vector<5x256xbf16> to vector<1x5x256xbf16>
    tpu.vector_store %arg8[%c0_15, %c0_16, %c0_17], %22 {strides = array<i32>} : memref<1x5x256xbf16, #tpu.memory_space<vmem>>, vector<1x5x256xbf16>,
    return
  }
  func.func @transform_0(%arg0: i32, %arg1: i32) -> (i32, i32, i32) {
    %c0_i32 = arith.constant 0 : i32
    %c0_i32_0 = arith.constant 0 : i32
    return %arg0, %c0_i32, %arg1 : i32, i32, i32
  }
  func.func @transform_1(%arg0: i32, %arg1: i32) -> (i32, i32) {
    %c0_i32 = arith.constant 0 : i32
    %c0_i32_0 = arith.constant 0 : i32
    %c0_i32_1 = arith.constant 0 : i32
    return %c0_i32, %c0_i32_0 : i32, i32
  }
  func.func @transform_2(%arg0: i32, %arg1: i32) -> (i32, i32) {
    %c0_i32 = arith.constant 0 : i32
    %c0_i32_0 = arith.constant 0 : i32
    %c0_i32_1 = arith.constant 0 : i32
    return %c0_i32, %c0_i32_0 : i32, i32
  }
  func.func @transform_3(%arg0: i32, %arg1: i32) -> (i32, i32) {
    %c0_i32 = arith.constant 0 : i32
    %c0_i32_0 = arith.constant 0 : i32
    %c0_i32_1 = arith.constant 0 : i32
    return %c0_i32, %c0_i32_0 : i32, i32
  }
  func.func @transform_4(%arg0: i32, %arg1: i32) -> (i32, i32) {
    %c0_i32 = arith.constant 0 : i32
    %c0_i32_0 = arith.constant 0 : i32
    %c0_i32_1 = arith.constant 0 : i32
    return %c0_i32, %c0_i32_0 : i32, i32
  }
  func.func @transform_5(%arg0: i32, %arg1: i32) -> (i32, i32, i32) {
    %c0_i32 = arith.constant 0 : i32
    %c0_i32_0 = arith.constant 0 : i32
    return %arg0, %c0_i32, %arg1 : i32, i32, i32
  }
  func.func @transform_6(%arg0: i32, %arg1: i32) -> (i32, i32, i32) {
    %c0_i32 = arith.constant 0 : i32
    %c0_i32_0 = arith.constant 0 : i32
    return %arg0, %c0_i32, %arg1 : i32, i32, i32
  }
}

</mosaic_0001>

<llo_original>
// kernel: tpu_custom_call.1
$region0: #{tpu_custom_call.1}
  #allocation0 [shape = 'u32[]', space=smem, size = 0x4, offset = 0x4, fixed_abs, tag = 'smem constant byte address 0x4 - core index']
  #allocation1 [shape = 'u32[144,128]{1,0:T(1,128)}', space=vmem, size = 0x12000, scoped, tag = 'internal scratch']
  %s0 = inlined_call_operand.hbm [shape: f32[2,4,256], index: 0, kind: input, shape index: {}]
  %s1 = inlined_call_operand.vmem [shape: bf16[2,4], index: 1, kind: input, shape index: {}]
  %s2 = inlined_call_operand.vmem [shape: f32[2,1], index: 2, kind: input, shape index: {}]
  %s3 = inlined_call_operand.vmem [shape: bf16[4,4], index: 3, kind: input, shape index: {}]
  %s4 = inlined_call_operand.vmem [shape: f32[4,1], index: 4, kind: input, shape index: {}]
  %s5 = inlined_call_operand.hbm [shape: bf16[2,2,256], index: 5, kind: output, shape index: {0}]
  %s6 = inlined_call_operand.vmem [shape: bf16[2,5,256], index: 6, kind: output, shape index: {1}]
  %7 = xla_tuple %s5, %s6
  %s8 = sld [smem:[#allocation0]]
  $region65: #{tpu_custom_call.1} parent=0
    _
  %s10 = ssub.s32 1, %s8
  %s11 = scalar_select 0, %s10, %s8
  $region1: #{tpu_custom_call.1} parent=0
    #allocation2 [shape = 'u8[8192]{0}', space=vmem, size = 0x2000, scoped, tag = 'input window, operand 0']
    #allocation3 [shape = 's32[2]{0}', space=sflag, size = 0x8, scoped, tag = 'scoped memory for tpu_custom_call.1']
    #allocation4 [shape = 's32[2]{0}', space=sflag, size = 0x8, scoped, tag = 'scoped memory for tpu_custom_call.1']
    #allocation5 [shape = 'u8[2048]{0}', space=vmem, size = 0x800, scoped, tag = 'output window, operand 0']
    %12 = vsyncpa [#allocation3], 0
    %s13 = scalar_lea.sflag [#allocation3], 1
    %14 = vsyncpa %s13, 0
    %15 = vsyncpa [#allocation4], 0
    %s16 = scalar_lea.sflag [#allocation4], 1
    %17 = vsyncpa %s16, 0
    loop: start=0, step=1, limit=4
    $region2: #{tpu_custom_call.1} parent=1 // loop_pre_header
      _
    $region3: #{tpu_custom_call.1} parent=1 // loop_header
      %s19 = sphi 0, %s23
      %p20 = scmp.ge.s32.totalorder %s19, 4
      %s26 = sphi 0, %s38
      %s27 = sphi 0, %s34
      %s28 = sphi 0, %s26
      %s29 = sphi 0, %s27
      %s30 = sphi 0, %s28
      %s31 = sphi 0, %s29
      %s43 = sphi 0, %s45
      %s46 = sphi 0, %s43
      %s47 = sphi 0, %s46
      %s63 = sphi 0, %s47
      %s67 = sphi 0, %s67
      %s69 = sphi 0, %s67
      %s70 = sphi 0, %s69
      %s84 = sphi 0, %s70
      %s88 = sphi 0, %s88
      %s90 = sphi 0, %s88
      %s91 = sphi 0, %s90
      %s105 = sphi 0, %s91
      %s109 = sphi 0, %s109
      %s111 = sphi 0, %s109
      %s112 = sphi 0, %s111
      %s126 = sphi 0, %s112
      %s130 = sphi 0, %s130
      %s132 = sphi 0, %s130
      %s133 = sphi 0, %s132
      %s147 = sphi 0, %s133
      %s155 = sphi 0, %s157
      %s158 = sphi 0, %s155
      %s159 = sphi 0, %s158
      %s175 = sphi 0, %s159
      %s183 = sphi 0, %s185
      %s186 = sphi 0, %s183
      %s187 = sphi 0, %s186
      %s203 = sphi 0, %s187
    $region4: #{tpu_custom_call.1} parent=1 // loop_header_branch
      %22 = sbr.rel (%p20) target = $region8
    $region5: #{tpu_custom_call.1} parent=1 // loop_body
      %s24 = ssub.s32 %s19, 1
      %s25 = ssub.s32 %s19, 2
      %s32 = sadd.s32 1, %s27
      %p33 = scmp.ge.s32.totalorder %s32, 1
      %s34 = scalar_select %p33, 0, %s32
      %s35 = sadd.s32 1, %s26
      %s36 = scalar_select %p33, %s35, %s26
      %p37 = scmp.ge.s32.totalorder %s36, 2
      %s38 = scalar_select %p37, 0, %s36
      %s39 = ssub.s32 %s26, %s38
      %s40 = ssub.s32 %s27, %s34
      %s41 = sor.u32 %s39, %s40
      %p42 = scmp.eq.s32.totalorder %s41, 0
      %s44 = sadd.s32 %s43, 1
      %s45 = scalar_select %p42, %s43, %s44
      %p48 = pneg %p42
      %p49 = scmp.eq.s32.totalorder %s19, 1
      %p50 = por %p48, %p49
      %p51 = scmp.ne.s32.totalorder %s43, %s46
      %p52 = scmp.eq.s32.totalorder %s19, 0
      %p53 = por %p51, %p52
      %p54 = scmp.ne.s32.totalorder %s43, %s46
      %p55 = scmp.eq.s32.totalorder %s24, 1
      %p56 = por %p54, %p55
      %p57 = scmp.ne.s32.totalorder %s46, %s47
      %p58 = scmp.eq.s32.totalorder %s24, 0
      %p59 = por %p57, %p58
      %p60 = scmp.ne.s32.totalorder %s46, %s47
      %p61 = scmp.eq.s32.totalorder %s25, 1
      %p62 = por %p60, %p61
      %p64 = scmp.ne.s32.totalorder %s47, %s63
      %p65 = scmp.eq.s32.totalorder %s25, 0
      %p66 = por %p64, %p65
      %s68 = sadd.s32 %s67, 1
      %p71 = scmp.eq.s32.totalorder %s19, 1
      %p72 = scmp.ne.s32.totalorder %s67, %s69
      %p73 = scmp.eq.s32.totalorder %s19, 0
      %p74 = por %p72, %p73
      %p75 = scmp.ne.s32.totalorder %s67, %s69
      %p76 = scmp.eq.s32.totalorder %s24, 1
      %p77 = por %p75, %p76
      %p78 = scmp.ne.s32.totalorder %s69, %s70
      %p79 = scmp.eq.s32.totalorder %s24, 0
      %p80 = por %p78, %p79
      %p81 = scmp.ne.s32.totalorder %s69, %s70
      %p82 = scmp.eq.s32.totalorder %s25, 1
      %p83 = por %p81, %p82
      %p85 = scmp.ne.s32.totalorder %s70, %s84
      %p86 = scmp.eq.s32.totalorder %s25, 0
      %p87 = por %p85, %p86
      %s89 = sadd.s32 %s88, 1
      %p92 = scmp.eq.s32.totalorder %s19, 1
      %p93 = scmp.ne.s32.totalorder %s88, %s90
      %p94 = scmp.eq.s32.totalorder %s19, 0
      %p95 = por %p93, %p94
      %p96 = scmp.ne.s32.totalorder %s88, %s90
      %p97 = scmp.eq.s32.totalorder %s24, 1
      %p98 = por %p96, %p97
      %p99 = scmp.ne.s32.totalorder %s90, %s91
      %p100 = scmp.eq.s32.totalorder %s24, 0
      %p101 = por %p99, %p100
      %p102 = scmp.ne.s32.totalorder %s90, %s91
      %p103 = scmp.eq.s32.totalorder %s25, 1
      %p104 = por %p102, %p103
      %p106 = scmp.ne.s32.totalorder %s91, %s105
      %p107 = scmp.eq.s32.totalorder %s25, 0
      %p108 = por %p106, %p107
      %s110 = sadd.s32 %s109, 1
      %p113 = scmp.eq.s32.totalorder %s19, 1
      %p114 = scmp.ne.s32.totalorder %s109, %s111
      %p115 = scmp.eq.s32.totalorder %s19, 0
      %p116 = por %p114, %p115
      %p117 = scmp.ne.s32.totalorder %s109, %s111
      %p118 = scmp.eq.s32.totalorder %s24, 1
      %p119 = por %p117, %p118
      %p120 = scmp.ne.s32.totalorder %s111, %s112
      %p121 = scmp.eq.s32.totalorder %s24, 0
      %p122 = por %p120, %p121
      %p123 = scmp.ne.s32.totalorder %s111, %s112
      %p124 = scmp.eq.s32.totalorder %s25, 1
      %p125 = por %p123, %p124
      %p127 = scmp.ne.s32.totalorder %s112, %s126
      %p128 = scmp.eq.s32.totalorder %s25, 0
      %p129 = por %p127, %p128
      %s131 = sadd.s32 %s130, 1
      %p134 = scmp.eq.s32.totalorder %s19, 1
      %p135 = scmp.ne.s32.totalorder %s130, %s132
      %p136 = scmp.eq.s32.totalorder %s19, 0
      %p137 = por %p135, %p136
      %p138 = scmp.ne.s32.totalorder %s130, %s132
      %p139 = scmp.eq.s32.totalorder %s24, 1
      %p140 = por %p138, %p139
      %p141 = scmp.ne.s32.totalorder %s132, %s133
      %p142 = scmp.eq.s32.totalorder %s24, 0
      %p143 = por %p141, %p142
      %p144 = scmp.ne.s32.totalorder %s132, %s133
      %p145 = scmp.eq.s32.totalorder %s25, 1
      %p146 = por %p144, %p145
      %p148 = scmp.ne.s32.totalorder %s133, %s147
      %p149 = scmp.eq.s32.totalorder %s25, 0
      %p150 = por %p148, %p149
      %s151 = ssub.s32 %s26, %s38
      %s152 = ssub.s32 %s27, %s34
      %s153 = sor.u32 %s151, %s152
      %p154 = scmp.eq.s32.totalorder %s153, 0
      %s156 = sadd.s32 %s155, 1
      %s157 = scalar_select %p154, %s155, %s156
      %p160 = pneg %p154
      %p161 = scmp.eq.s32.totalorder %s19, 1
      %p162 = por %p160, %p161
      %p163 = scmp.ne.s32.totalorder %s155, %s158
      %p164 = scmp.eq.s32.totalorder %s19, 0
      %p165 = por %p163, %p164
      %p166 = scmp.ne.s32.totalorder %s155, %s158
      %p167 = scmp.eq.s32.totalorder %s24, 1
      %p168 = por %p166, %p167
      %p169 = scmp.ne.s32.totalorder %s158, %s159
      %p170 = scmp.eq.s32.totalorder %s24, 0
      %p171 = por %p169, %p170
      %p172 = scmp.ne.s32.totalorder %s158, %s159
      %p173 = scmp.eq.s32.totalorder %s25, 1
      %p174 = por %p172, %p173
      %p176 = scmp.ne.s32.totalorder %s159, %s175
      %p177 = scmp.eq.s32.totalorder %s25, 0
      %p178 = por %p176, %p177
      %s179 = ssub.s32 %s26, %s38
      %s180 = ssub.s32 %s27, %s34
      %s181 = sor.u32 %s179, %s180
      %p182 = scmp.eq.s32.totalorder %s181, 0
      %s184 = sadd.s32 %s183, 1
      %s185 = scalar_select %p182, %s183, %s184
      %p188 = pneg %p182
      %p189 = scmp.eq.s32.totalorder %s19, 1
      %p190 = por %p188, %p189
      %p191 = scmp.ne.s32.totalorder %s183, %s186
      %p192 = scmp.eq.s32.totalorder %s19, 0
      %p193 = por %p191, %p192
      %p194 = scmp.ne.s32.totalorder %s183, %s186
      %p195 = scmp.eq.s32.totalorder %s24, 1
      %p196 = por %p194, %p195
      %p197 = scmp.ne.s32.totalorder %s186, %s187
      %p198 = scmp.eq.s32.totalorder %s24, 0
      %p199 = por %p197, %p198
      %p200 = scmp.ne.s32.totalorder %s186, %s187
      %p201 = scmp.eq.s32.totalorder %s25, 1
      %p202 = por %p200, %p201
      %p204 = scmp.ne.s32.totalorder %s187, %s203
      %p205 = scmp.eq.s32.totalorder %s25, 0
      %p206 = por %p204, %p205
      %p207 = scmp.le.s32.totalorder 1, %s19
      %p208 = scmp.lt.s32.totalorder %s19, 3
      %p209 = pnand %p207, %p208
      %p210 = pneg %p209
      // Predicated region
      $region9: #{tpu_custom_call.1} parent=5 // pred_check
        _
      $region10: #{tpu_custom_call.1} parent=5 // pred_check_branch
        %212 = sbr.rel (%p209) target = $region12
      $region11: #{tpu_custom_call.1} parent=5 // pred_region
        %s213 = ssub.s32 %s19, 1
        // Predicated region
        $region13: #{tpu_custom_call.1} parent=11 // pred_check
          %p214 = pneg %p80
        $region14: #{tpu_custom_call.1} parent=11 // pred_check_branch
          %216 = sbr.rel (%p214) target = $region16
        $region15: #{tpu_custom_call.1} parent=11 // pred_region
          _
        $region16: #{tpu_custom_call.1} parent=11 // pred_fallthru
          _
        // Predicated region
        $region17: #{tpu_custom_call.1} parent=11 // pred_check
          %p217 = pneg %p101
        $region18: #{tpu_custom_call.1} parent=11 // pred_check_branch
          %219 = sbr.rel (%p217) target = $region20
        $region19: #{tpu_custom_call.1} parent=11 // pred_region
          _
        $region20: #{tpu_custom_call.1} parent=11 // pred_fallthru
          _
        // Predicated region
        $region21: #{tpu_custom_call.1} parent=11 // pred_check
          %p220 = pneg %p122
        $region22: #{tpu_custom_call.1} parent=11 // pred_check_branch
          %222 = sbr.rel (%p220) target = $region24
        $region23: #{tpu_custom_call.1} parent=11 // pred_region
          _
        $region24: #{tpu_custom_call.1} parent=11 // pred_fallthru
          _
        // Predicated region
        $region25: #{tpu_custom_call.1} parent=11 // pred_check
          %p223 = pneg %p143
        $region26: #{tpu_custom_call.1} parent=11 // pred_check_branch
          %225 = sbr.rel (%p223) target = $region28
        $region27: #{tpu_custom_call.1} parent=11 // pred_region
          _
        $region28: #{tpu_custom_call.1} parent=11 // pred_fallthru
          _
      $region12: #{tpu_custom_call.1} parent=5 // pred_fallthru
        _
      %p226 = scmp.lt.s32.totalorder %s19, 2
      // Predicated region
      $region29: #{tpu_custom_call.1} parent=5 // pred_check
        %p227 = pneg %p226
      $region30: #{tpu_custom_call.1} parent=5 // pred_check_branch
        %229 = sbr.rel (%p227) target = $region32
      $region31: #{tpu_custom_call.1} parent=5 // pred_region
        // Predicated region
        $region33: #{tpu_custom_call.1} parent=31 // pred_check
          %p230 = pneg %p53
        $region34: #{tpu_custom_call.1} parent=31 // pred_check_branch
          %232 = sbr.rel (%p230) target = $region36
        $region35: #{tpu_custom_call.1} parent=31 // pred_region
          %s233 = sand.u32 %s43, 1
          %s234 = scalar_lea.sflag [#allocation3], %s233
          %s235 = sand.u32 %s43, 1
          %s236 = smul.addr %s235, 8
          %s237 = scalar_lea.vmem [#allocation2], %s236
          %s238 = smul.u32 2, %s27
          %s240 = ssub.s32 128, 128
          %241 = vsyncadd %s234, %s240
          %s242 = smul.addr %s26, 2
          %s243 = sadd.s32 %s238, %s242
          %s244 = smul.addr %s243, 64
          %s245 = scalar_lea.hbm %s0, %s244
          %s247 = sshll.u32 %s237, 4
          %s248 = int_to_ptr.vmem [resolvable:$true] %s247
          %250 = dma.hbm_to_vmem [thread:$0]  %s245, 128, %s248, %s234
        $region36: #{tpu_custom_call.1} parent=31 // pred_fallthru
          _
      $region32: #{tpu_custom_call.1} parent=5 // pred_fallthru
        _
      %p251 = scmp.le.s32.totalorder 1, %s19
      %p252 = scmp.lt.s32.totalorder %s19, 3
      %p253 = pnand %p251, %p252
      %p254 = pneg %p253
      // Predicated region
      $region37: #{tpu_custom_call.1} parent=5 // pred_check
        _
      $region38: #{tpu_custom_call.1} parent=5 // pred_check_branch
        %256 = sbr.rel (%p253) target = $region40
      $region39: #{tpu_custom_call.1} parent=5 // pred_region
        %s257 = ssub.s32 %s19, 1
        %s258 = sand.u32 %s46, 1
        %s259 = scalar_lea.sflag [#allocation3], %s258
        %s260 = sand.u32 %s46, 1
        %s261 = smul.addr %s260, 8
        %s262 = scalar_lea.vmem [#allocation2], %s261
        // Predicated region
        $region41: #{tpu_custom_call.1} parent=39 // pred_check
          %p263 = pneg %p59
        $region42: #{tpu_custom_call.1} parent=39 // pred_check_branch
          %265 = sbr.rel (%p263) target = $region44
        $region43: #{tpu_custom_call.1} parent=39 // pred_region
          %266 = dma.done %s259, 128
        $region44: #{tpu_custom_call.1} parent=39 // pred_fallthru
          _
        %s267 = sand.u32 %s46, 1
        %s268 = scalar_lea.sflag [#allocation3], %s267
        %s269 = sand.u32 %s46, 1
        %s270 = smul.addr %s269, 8
        %s271 = scalar_lea.vmem [#allocation2], %s270
        %p272 = pneg %p59
        %p273 = pneg %p56
        %p274 = pneg %p80
        %p275 = pneg %p77
        %p276 = pneg %p101
        %p277 = pneg %p98
        %p278 = pneg %p122
        %p279 = pneg %p119
        %p280 = pneg %p143
        %p281 = pneg %p140
        %p282 = pneg %p171
        %p283 = pneg %p168
        %s284 = sand.u32 %s158, 1
        %s285 = scalar_lea.sflag [#allocation4], %s284
        %s286 = sand.u32 %s158, 1
        %s287 = smul.addr %s286, 2
        %s288 = scalar_lea.vmem [#allocation5], %s287
        %p289 = pneg %p199
        %p290 = pneg %p196
        %s291 = smul.u32 2, %s29
        %p292 = scmp.lt.s32.totalorder %s28, 1
        %s293 = scalar_select %p292, %s28, 1
        %p294 = scmp.lt.s32.totalorder %s291, 1
        %s295 = scalar_select %p294, %s291, 1
        %s296 = smul.addr %s293, 2
        %s297 = sadd.s32 %s295, %s296
        %s298 = smul.addr %s297, 4
        %s299 = scalar_lea.vmem %s6, %s298
        %s300 = smul.u32 2, %s29
        %s301 = smul.u32 2, %s29
        %s302 = smul.u32 2, %s29
        %p303 = scmp.lt.s32.totalorder %s28, 1
        %s304 = scalar_select %p303, %s28, 1
        %p305 = scmp.lt.s32.totalorder %s302, 1
        %s306 = scalar_select %p305, %s302, 1
        %s307 = smul.addr %s304, 2
        %s308 = sadd.s32 %s306, %s307
        %s309 = smul.addr %s308, 4
        %s310 = scalar_lea.vmem %s6, %s309
        %s311 = smul.u32 2, %s29
        %v313 = vld [vmem:[%s262] sm:$0xff]
        %v315 = vcombine.high %v313, %v313
        %v317 = vpack.c.bf16 %v313, %v313
        %v318 = vpack.c.bf16 %v315, %v315
        %v319 = vld [vmem:[%s1] sm:$0x1]
        %v320 = vld [vmem:[%s2] sm:$0x3]
        %322 = vset.pattern.permute.xlu0 0
        %323 = vperm.xlu0 %322, %v320
        %v324 = vpop.permute.xlu0 %323
        %vm326 = vcmask 31744
        %v328 = vsel %vm326, %v319, 0
        %vm330 = vcmask 1041408
        %v332 = vsel %vm330, %v317, 0
        %v335 = vsel %vm330, %v318, 0
        %337 = vmatprep.subr.bf16.mxu0 %v335
        %338 = vmatpush1.bf16.msra.mxu0 %v332
        %339 = vmatprep.subr.bf16.mxu0 0
        %340 = vmatpush1.bf16.msra.mxu0 0
        %341 = vmatprep.subr.bf16.mxu0 0
        %342 = vmatpush1.bf16.msra.mxu0 0
        %343 = vmatprep.subr.bf16.mxu0 0
        %344 = vmatpush1.bf16.msra.mxu0 0
        %345 = vmatprep.subr.bf16.mxu0 0
        %346 = vmatpush1.bf16.msra.mxu0 0
        %347 = vmatprep.subr.bf16.mxu0 0
        %348 = vmatpush1.bf16.msra.mxu0 0
        %349 = vmatprep.subr.bf16.mxu0 0
        %350 = vmatpush1.bf16.msra.mxu0 0
        %351 = vmatprep.subr.bf16.mxu0 0
        %352 = vmatpush1.bf16.msra.mxu0 0
        %353 = vmatprep.subr.bf16.mxu0 0
        %354 = vmatpush1.bf16.msra.mxu0 0
        %355 = vmatprep.subr.bf16.mxu0 0
        %356 = vmatpush1.bf16.msra.mxu0 0
        %357 = vmatprep.subr.bf16.mxu0 0
        %358 = vmatpush1.bf16.msra.mxu0 0
        %359 = vmatprep.subr.bf16.mxu0 0
        %360 = vmatpush1.bf16.msra.mxu0 0
        %361 = vmatprep.subr.bf16.mxu0 0
        %362 = vmatpush1.bf16.msra.mxu0 0
        %363 = vmatprep.subr.bf16.mxu0 0
        %364 = vmatpush1.bf16.msra.mxu0 0
        %365 = vmatprep.subr.bf16.mxu0 0
        %366 = vmatpush1.bf16.msra.mxu0 0
        %367 = vmatprep.subr.bf16.mxu0 0
        %368 = vmatpush1.bf16.msra.mxu0 0
        %369 = vmatprep.mubr.bf16.mxu0 0
        %370 = vmatmul.mubr.bf16.gmra.mrb[0].mxu0 %v328
        %v371 = vpop.f32.mrb[0].mxu0
        %v372 = vadd.f32 %v324, %v371
        %v373 = vpop.f32.mrb[0].mxu0
        %v374 = vadd.f32 %v324, %v373
        %v375 = vpop.f32.mrb[0].mxu0
        %v376 = vpop.f32.mrb[0].mxu0
        %377 = vdwg.mxu0
        %v378 = vld [vmem:[%s3] sm:$0x3]
        %v379 = vld [vmem:[%s4] sm:$0xf]
        %381 = vset.pattern.permute.xlu0 0
        %382 = vperm.xlu0 %381, %v379
        %v383 = vpop.permute.xlu0 %382
        %v386 = vsel %vm326, %v378, 0
        %388 = vmatprep.subr.bf16.mxu0 %v335
        %389 = vmatpush1.bf16.msra.mxu0 %v332
        %390 = vmatprep.subr.bf16.mxu0 0
        %391 = vmatpush1.bf16.msra.mxu0 0
        %392 = vmatprep.subr.bf16.mxu0 0
        %393 = vmatpush1.bf16.msra.mxu0 0
        %394 = vmatprep.subr.bf16.mxu0 0
        %395 = vmatpush1.bf16.msra.mxu0 0
        %396 = vmatprep.subr.bf16.mxu0 0
        %397 = vmatpush1.bf16.msra.mxu0 0
        %398 = vmatprep.subr.bf16.mxu0 0
        %399 = vmatpush1.bf16.msra.mxu0 0
        %400 = vmatprep.subr.bf16.mxu0 0
        %401 = vmatpush1.bf16.msra.mxu0 0
        %402 = vmatprep.subr.bf16.mxu0 0
        %403 = vmatpush1.bf16.msra.mxu0 0
        %404 = vmatprep.subr.bf16.mxu0 0
        %405 = vmatpush1.bf16.msra.mxu0 0
        %406 = vmatprep.subr.bf16.mxu0 0
        %407 = vmatpush1.bf16.msra.mxu0 0
        %408 = vmatprep.subr.bf16.mxu0 0
        %409 = vmatpush1.bf16.msra.mxu0 0
        %410 = vmatprep.subr.bf16.mxu0 0
        %411 = vmatpush1.bf16.msra.mxu0 0
        %412 = vmatprep.subr.bf16.mxu0 0
        %413 = vmatpush1.bf16.msra.mxu0 0
        %414 = vmatprep.subr.bf16.mxu0 0
        %415 = vmatpush1.bf16.msra.mxu0 0
        %416 = vmatprep.subr.bf16.mxu0 0
        %417 = vmatpush1.bf16.msra.mxu0 0
        %418 = vmatprep.subr.bf16.mxu0 0
        %419 = vmatpush1.bf16.msra.mxu0 0
        %420 = vmatprep.mubr.bf16.mxu0 0
        %421 = vmatmul.mubr.bf16.gmra.mrb[0].mxu0 %v386
        %v422 = vpop.f32.mrb[0].mxu0
        %v423 = vadd.f32 %v383, %v422
        %v424 = vpop.f32.mrb[0].mxu0
        %v425 = vadd.f32 %v383, %v424
        %v426 = vpop.f32.mrb[0].mxu0
        %v427 = vpop.f32.mrb[0].mxu0
        %428 = vdwg.mxu0
        %vm429 = vcmask 1043456
        %v430 = vsel %vm429, %v423, 1.0
        %v431 = vsel %vm429, %v425, 1.0
        %v432 = vpack.c.bf16 %v372, %v372
        %v433 = vpack.c.bf16 %v374, %v374
        %v436 = vcombine.low %v432, %v433
        %v438 = vunpack.c.l.s4 1966171168
        %v439 = vunpack.c.0.s8 %v438
        %v440 = vlaneseq
        %v441 = vshrl.u32 %v440, 7
        %v442 = vsub.s32 %v439, %v441
        %v443 = vrot.slane %v436, %v442
        %v445 = vunpack.c.l.s4 1966171168
        %v446 = vunpack.c.0.s8 %v445
        %v447 = vlaneseq
        %v448 = vshrl.u32 %v447, 7
        %v449 = vsub.s32 %v446, %v448
        %v450 = vrot.slane %v443, %v449
        %452 = vst [vmem:[%s288] sm:$0x3] %v450
        %v453 = vpack.c.bf16 %v430, %v430
        %v454 = vpack.c.bf16 %v431, %v431
        %v457 = vunpack.c.l.b16 %v453
        %v458 = vunpack.c.l.b16 %v454
        %v459 = vpack.c.b16 %v458, %v457
        %vm461 = vcmask 1042432
        %vm462 = vsmask.f32 2304
        %vm463 = vmand %vm461, %vm462
        %vm464 = vcmask 1046532
        %vm465 = vsmask.f32 6400
        %vm466 = vmand %vm464, %vm465
        %vm467 = vmor %vm466, %vm463
        %v468 = vld [vmem:[%s310] sm:$0x77]
        %v469 = vsel %vm467, %v459, %v468
        %470 = vst [vmem:[%s310] sm:$0x77] %v469
        %s471 = sand.u32 %s158, 1
        %s472 = scalar_lea.sflag [#allocation4], %s471
        %s473 = sand.u32 %s158, 1
        %s474 = smul.addr %s473, 2
        %s475 = scalar_lea.vmem [#allocation5], %s474
        %s476 = smul.u32 2, %s29
        %p477 = scmp.lt.s32.totalorder %s28, 1
        %s478 = scalar_select %p477, %s28, 1
        %p479 = scmp.lt.s32.totalorder %s476, 1
        %s480 = scalar_select %p479, %s476, 1
        %s481 = smul.addr %s478, 2
        %s482 = sadd.s32 %s480, %s481
        %s483 = smul.addr %s482, 4
        %s484 = scalar_lea.vmem %s6, %s483
        // Predicated region
        $region45: #{tpu_custom_call.1} parent=39 // pred_check
          %p485 = pneg %p168
        $region46: #{tpu_custom_call.1} parent=39 // pred_check_branch
          %487 = sbr.rel (%p485) target = $region48
        $region47: #{tpu_custom_call.1} parent=39 // pred_region
          %s488 = smul.u32 2, %s29
          %s490 = ssub.s32 32, 32
          %491 = vsyncadd %s472, %s490
          %s492 = smul.addr %s28, 2
          %s493 = sadd.s32 %s488, %s492
          %s494 = smul.addr %s493, 16
          %s495 = scalar_lea.hbm %s5, %s494
          %s497 = sshll.u32 %s475, 4
          %s498 = int_to_ptr.vmem [resolvable:$true] %s497
          %500 = dma.vmem_to_hbm [thread:$0]  %s498, 32, %s495, %s472
        $region48: #{tpu_custom_call.1} parent=39 // pred_fallthru
          _
        // Predicated region
        $region49: #{tpu_custom_call.1} parent=39 // pred_check
          %p501 = pneg %p196
        $region50: #{tpu_custom_call.1} parent=39 // pred_check_branch
          %503 = sbr.rel (%p501) target = $region52
        $region51: #{tpu_custom_call.1} parent=39 // pred_region
          %s504 = smul.u32 2, %s29
        $region52: #{tpu_custom_call.1} parent=39 // pred_fallthru
          _
      $region40: #{tpu_custom_call.1} parent=5 // pred_fallthru
        _
      %p505 = scmp.le.s32.totalorder 2, %s19
      // Predicated region
      $region53: #{tpu_custom_call.1} parent=5 // pred_check
        %p506 = pneg %p505
      $region54: #{tpu_custom_call.1} parent=5 // pred_check_branch
        %508 = sbr.rel (%p506) target = $region56
      $region55: #{tpu_custom_call.1} parent=5 // pred_region
        %s509 = ssub.s32 %s19, 2
        // Predicated region
        $region57: #{tpu_custom_call.1} parent=55 // pred_check
          %p510 = pneg %p174
        $region58: #{tpu_custom_call.1} parent=55 // pred_check_branch
          %512 = sbr.rel (%p510) target = $region60
        $region59: #{tpu_custom_call.1} parent=55 // pred_region
          %s513 = sand.u32 %s159, 1
          %s514 = scalar_lea.sflag [#allocation4], %s513
          %s515 = sand.u32 %s159, 1
          %s516 = smul.addr %s515, 2
          %s517 = scalar_lea.vmem [#allocation5], %s516
          %518 = dma.done %s514, 32
        $region60: #{tpu_custom_call.1} parent=55 // pred_fallthru
          _
        // Predicated region
        $region61: #{tpu_custom_call.1} parent=55 // pred_check
          %p519 = pneg %p202
        $region62: #{tpu_custom_call.1} parent=55 // pred_check_branch
          %521 = sbr.rel (%p519) target = $region64
        $region63: #{tpu_custom_call.1} parent=55 // pred_region
          %s522 = smul.u32 2, %s31
          %p523 = scmp.lt.s32.totalorder %s30, 1
          %s524 = scalar_select %p523, %s30, 1
          %p525 = scmp.lt.s32.totalorder %s522, 1
          %s526 = scalar_select %p525, %s522, 1
          %s527 = smul.addr %s524, 2
          %s528 = sadd.s32 %s526, %s527
          %s529 = smul.addr %s528, 4
          %s530 = scalar_lea.vmem %s6, %s529
        $region64: #{tpu_custom_call.1} parent=55 // pred_fallthru
          _
      $region56: #{tpu_custom_call.1} parent=5 // pred_fallthru
        _
    $region6: #{tpu_custom_call.1} parent=1 // loop_footer
      %s23 = sadd.s32 1, %s19
    $region7: #{tpu_custom_call.1} parent=1 // loop_footer_branch
      %18 = sbr.rel target = $region3
    $region8: #{tpu_custom_call.1} parent=1 // loop_exit
      _
    %531 = vsyncpa [#allocation3], 1
    %s532 = scalar_lea.sflag [#allocation3], 1
    %533 = vsyncpa %s532, 1
    %534 = vsyncpa [#allocation4], 1
    %s535 = scalar_lea.sflag [#allocation4], 1
    %536 = vsyncpa %s535, 1

</llo_original>
